<compile_context>
chip_gen: v6e
topology: v6e:2x2x1
jax: 0.10.0
libtpu: 0.0.40
codegen_flags: <defaults>
</compile_context>

<pallas_src>
import functools

import jax
import jax.numpy as jnp
from jax.experimental import pallas as pl
from jax.experimental.pallas import tpu as pltpu


def _add_pe_kernel(x_ref, pe_ref, o_ref, *, batch):
    # x_ref: (tS, B*D), pe_ref: (tS, D)
    x = x_ref[...]
    pe = pe_ref[...].astype(x.dtype)
    if batch > 1:
        # broadcast pe over the batch lanes: [pe | pe | ... ] along the lane axis
        pe = jnp.concatenate([pe] * batch, axis=-1)
    o_ref[...] = (x + pe).astype(o_ref.dtype)


def _add_pe_dropout_kernel(x_ref, pe_ref, bits_ref, o_ref, *, batch,
                           keep_threshold, scale):
    # x_ref: (tS, B*D), pe_ref: (tS, D), bits_ref: (tS, B*D) uint32
    x = x_ref[...]
    pe = pe_ref[...].astype(x.dtype)
    if batch > 1:
        pe = jnp.concatenate([pe] * batch, axis=-1)
    y = x + pe
    # inverted dropout: drop iff bits < round(p * 2^32)  (integer threshold)
    keep = bits_ref[...] >= jnp.uint32(keep_threshold)
    y = jnp.where(keep, y * scale, jnp.zeros_like(y))
    o_ref[...] = y.astype(o_ref.dtype)


def _choose_seq_tile(S, row_bytes):
    """Sequence-tile size: whole array if small, else a multiple of 8 rows sized
    so one x tile is ~2 MiB (fits double-buffered in v5e/v6e/v7x scoped VMEM)."""
    target = 2 * 1024 * 1024
    if S * row_bytes <= target:
        return S
    ts = (target // row_bytes) // 8 * 8
    return int(max(8, min(ts, S)))


def learnable_positional_encoding(x, pe, *, dropout_p=0.1, training=False,
                                  rng_key=None):
    """x: [S, B, D], pe: [max_len, 1, D] -> [S, B, D]"""
    S, B, D = x.shape
    max_len = pe.shape[0]
    BD = B * D
    itemsize = jnp.dtype(x.dtype).itemsize

    x2 = x.reshape(S, BD)             # free reshape (collapse minor dims)
    pe2 = pe.reshape(max_len, D)      # free reshape

    tS = _choose_seq_tile(S, BD * itemsize)
    grid = (pl.cdiv(S, tS),)

    # pe block: pick the matching S-rows straight out of the full table.
    if tS == S and (S % 8 != 0) and (S != max_len):
        # Block sublane dim must be a multiple of 8 or equal the full dim;
        # fall back to a tiny S*D slice only in this corner case.
        pe_in = pe2[:S]
        pe_index_map = lambda i: (0, 0)
    else:
        pe_in = pe2
        pe_index_map = lambda i: (i, 0)

    x_spec = pl.BlockSpec((tS, BD), lambda i: (i, 0))
    pe_spec = pl.BlockSpec((tS, D), pe_index_map)
    out_spec = pl.BlockSpec((tS, BD), lambda i: (i, 0))

    use_dropout = bool(training) and float(dropout_p) > 0.0

    bytes_accessed = 2 * S * BD * itemsize + S * D * jnp.dtype(pe.dtype).itemsize
    flops = S * BD

    if use_dropout:
        if rng_key is None:
            rng_key = jax.random.PRNGKey(0)
        bits = jax.random.bits(rng_key, (S, BD), dtype=jnp.uint32)
        keep_threshold = min(int(round(float(dropout_p) * (1 << 32))), (1 << 32) - 1)
        scale = 1.0 / (1.0 - float(dropout_p))
        kernel = functools.partial(_add_pe_dropout_kernel, batch=B,
                                   keep_threshold=keep_threshold, scale=scale)
        in_specs = [x_spec, pe_spec, pl.BlockSpec((tS, BD), lambda i: (i, 0))]
        operands = (x2, pe_in, bits)
        bytes_accessed += S * BD * 4
        flops += 2 * S * BD
    else:
        kernel = functools.partial(_add_pe_kernel, batch=B)
        in_specs = [x_spec, pe_spec]
        operands = (x2, pe_in)

    out2 = pl.pallas_call(
        kernel,
        out_shape=jax.ShapeDtypeStruct((S, BD), x.dtype),
        grid=grid,
        in_specs=in_specs,
        out_specs=out_spec,
        compiler_params=pltpu.CompilerParams(
            dimension_semantics=("parallel",)),
        cost_estimate=pl.CostEstimate(flops=flops, transcendentals=0,
                                      bytes_accessed=bytes_accessed),
    )(*operands)

    return out2.reshape(S, B, D)


if __name__ == "__main__":
    # Module hyperparameters (small, consistent with the forward pass)
    d_model = 32
    max_len = 1024
    seq_len = 8
    batch = 2
    dropout_p = 0.1

    key = jax.random.PRNGKey(0)
    k_pe, k_x, k_drop = jax.random.split(key, 3)

    # Deterministic parameter init: uniform(-0.02, 0.02), shape (max_len, 1, d_model)
    pe = jax.random.uniform(
        k_pe, (max_len, 1, d_model), dtype=jnp.float32, minval=-0.02, maxval=0.02
    )
    x = jax.random.normal(k_x, (seq_len, batch, d_model), dtype=jnp.float32)

    # Eval mode (dropout is identity) -- exact check against pure JAX
    out_eval = learnable_positional_encoding(x, pe, dropout_p=dropout_p, training=False)
    out_eval = jax.block_until_ready(out_eval)
    ref = x + pe[:seq_len]
    assert out_eval.shape == (seq_len, batch, d_model)
    assert jnp.allclose(out_eval, ref, atol=1e-6, rtol=1e-6), "eval-mode mismatch"

    # Training mode (inverted dropout with deterministic random bits)
    out_train = learnable_positional_encoding(
        x, pe, dropout_p=dropout_p, training=True, rng_key=k_drop
    )
    out_train = jax.block_until_ready(out_train)
    assert out_train.shape == (seq_len, batch, d_model)
    # kept entries must equal (x + pe) / (1 - p); dropped entries are exactly 0
    kept = out_train != 0
    scaled_ref = ref / (1.0 - dropout_p)
    assert jnp.allclose(
        jnp.where(kept, out_train, 0.0), jnp.where(kept, scaled_ref, 0.0),
        atol=1e-5, rtol=1e-5,
    ), "train-mode mismatch"

    print("KERNEL_OK")
</pallas_src>

<mosaic_0001>
module attributes {stable_mosaic.version = 11 : i64} {
  func.func @_add_pe_kernel(%arg0: i32, %arg1: memref<8x64xf32, #tpu.memory_space<vmem>>, %arg2: memref<8x32xf32, #tpu.memory_space<vmem>>, %arg3: memref<8x64xf32, #tpu.memory_space<vmem>>) attributes {dimension_semantics = [#tpu.dimension_semantics<parallel>], iteration_bounds = array<i64: 1>, scalar_prefetch = 0 : i64, scratch_operands = 0 : i64, tpu.core_type = #tpu.core_type<tc>, window_params = [{transform_indices = @transform_0, window_bounds = array<i64: 8, 64>}, {transform_indices = @transform_1, window_bounds = array<i64: 8, 32>}, {transform_indices = @transform_2, window_bounds = array<i64: 8, 64>}]} {
    %c0 = arith.constant 0 : index
    %c0_0 = arith.constant 0 : index
    %0 = vector.load %arg1[%c0, %c0_0] : memref<8x64xf32, #tpu.memory_space<vmem>>, vector<8x64xf32>
    %c0_1 = arith.constant 0 : index
    %c0_2 = arith.constant 0 : index
    %1 = vector.load %arg2[%c0_1, %c0_2] : memref<8x32xf32, #tpu.memory_space<vmem>>, vector<8x32xf32>
    %2 = tpu.concatenate %1, %1 in 1 : vector<8x32xf32>, vector<8x32xf32> -> vector<8x64xf32>
    %3 = arith.addf %0, %2 : vector<8x64xf32>
    %c0_3 = arith.constant 0 : index
    %c0_4 = arith.constant 0 : index
    %4 = vector.load %arg3[%c0_3, %c0_4] : memref<8x64xf32, #tpu.memory_space<vmem>>, vector<8x64xf32>
    tpu.vector_store %arg3[%c0_3, %c0_4], %3 {strides = array<i32>} : memref<8x64xf32, #tpu.memory_space<vmem>>, vector<8x64xf32>,
    return
  }
  func.func @transform_0(%arg0: i32) -> (i32, i32) {
    %c0_i32 = arith.constant 0 : i32
    %c0_i32_0 = arith.constant 0 : i32
    return %arg0, %c0_i32 : i32, i32
  }
  func.func @transform_1(%arg0: i32) -> (i32, i32) {
    %c0_i32 = arith.constant 0 : i32
    %c0_i32_0 = arith.constant 0 : i32
    return %arg0, %c0_i32 : i32, i32
  }
  func.func @transform_2(%arg0: i32) -> (i32, i32) {
    %c0_i32 = arith.constant 0 : i32
    %c0_i32_0 = arith.constant 0 : i32
    return %arg0, %c0_i32 : i32, i32
  }
}

</mosaic_0001>

<llo_original>
// kernel: tpu_custom_call.1
$region0: #{tpu_custom_call.1}
  #allocation0 [shape = 'u32[]', space=smem, size = 0x4, offset = 0x4, fixed_abs, tag = 'smem constant byte address 0x4 - core index']
  #allocation1 [shape = 'u32[144,128]{1,0:T(1,128)}', space=vmem, size = 0x12000, scoped, tag = 'internal scratch']
  %s0 = inlined_call_operand.vmem [shape: f32[8,64], index: 0, kind: input, shape index: {}]
  %s1 = inlined_call_operand.vmem [shape: f32[1024,32], index: 1, kind: input, shape index: {}]
  %s2 = inlined_call_operand.hbm [shape: f32[8,64], index: 2, kind: output, shape index: {}]
  %s3 = sld [smem:[#allocation0]]
  $region18: #{tpu_custom_call.1} parent=0
    _
  %s5 = ssub.s32 1, %s3
  %s6 = scalar_select 0, %s5, %s3
  $region1: #{tpu_custom_call.1} parent=0
    #allocation2 [shape = 'u8[4096]{0}', space=vmem, size = 0x1000, scoped, tag = 'output window, operand 0, single buffered']
    #allocation3 [shape = 's32[1]{0}', space=sflag, size = 0x4, scoped, tag = 'scoped memory for tpu_custom_call.1']
    %7 = vsyncpa [#allocation3], 0
    // Predicated region
    $region2: #{tpu_custom_call.1} parent=1 // pred_check
      _
    $region3: #{tpu_custom_call.1} parent=1 // pred_check_branch
      %9 = sbr.rel (0) target = $region5
    $region4: #{tpu_custom_call.1} parent=1 // pred_region
      _
    $region5: #{tpu_custom_call.1} parent=1 // pred_fallthru
      _
    // Predicated region
    $region6: #{tpu_custom_call.1} parent=1 // pred_check
      _
    $region7: #{tpu_custom_call.1} parent=1 // pred_check_branch
      %11 = sbr.rel (0) target = $region9
    $region8: #{tpu_custom_call.1} parent=1 // pred_region
      _
    $region9: #{tpu_custom_call.1} parent=1 // pred_fallthru
      _
    %v12 = vld [vmem:[%s0] sm:$0xff]
    %v13 = vld [vmem:[%s1] sm:$0xff]
    %15 = vrot.lane.b32.xlu0 %v13, 32
    %v16 = vpop.permute.xlu0 %15
    %vm18 = vcmask 261120
    %v19 = vsel %vm18, %v13, %v16
    %v20 = vadd.f32 %v12, %v19
    %vm21 = vcmask 523264
    %22 = vst.msk [vmem:[#allocation2] sm:$0xff] %vm21, %v20
    // Predicated region
    $region10: #{tpu_custom_call.1} parent=1 // pred_check
      _
    $region11: #{tpu_custom_call.1} parent=1 // pred_check_branch
      %24 = sbr.rel (0) target = $region13
    $region12: #{tpu_custom_call.1} parent=1 // pred_region
      %s26 = ssub.s32 128, 128
      %27 = vsyncadd [#allocation3], %s26
      %s29 = sshll.u32 [#allocation2], 4
      %s30 = int_to_ptr.vmem [resolvable:$true] %s29
      %32 = dma.vmem_to_hbm [thread:$0]  %s30, 128, %s2, [#allocation3]
    $region13: #{tpu_custom_call.1} parent=1 // pred_fallthru
      _
    // Predicated region
    $region14: #{tpu_custom_call.1} parent=1 // pred_check
      _
    $region15: #{tpu_custom_call.1} parent=1 // pred_check_branch
      %34 = sbr.rel (0) target = $region17
    $region16: #{tpu_custom_call.1} parent=1 // pred_region
      %35 = dma.done [#allocation3], 128
    $region17: #{tpu_custom_call.1} parent=1 // pred_fallthru
      _
    %36 = vsyncpa [#allocation3], 1

</llo_original>
